<compile_context>
chip_gen: v5e
topology: v5e:2x2
jax: 0.10.0
libtpu: 0.0.40
codegen_flags: <defaults>
</compile_context>

<pallas_src>
import jax
import jax.numpy as jnp
from jax.experimental import pallas as pl
from jax.experimental.pallas import tpu as pltpu


def _silu(h):
    # sigmoid lowers to lax.logistic on the EUP (its own VLIW slot).
    return h * jax.nn.sigmoid(h)


def head_kernel(x_ref, w1_ref, b1_ref, w2_ref, b2_ref, w3_ref, b3_ref, o_ref):
    x = x_ref[...]                                   # (TB, L, C): C lane-dense
    C = x.shape[-1]
    inv_l = 1.0 / x.shape[1]

    # Adaptive max/avg pooling to output_size=1: reduce over L (sublane axis).
    mx = jnp.max(x, axis=1)                          # (TB, C)
    av = jnp.sum(x, axis=1) * inv_l                  # (TB, C)

    # First Linear on cat([max, avg], dim=1), as a split-dot over the single
    # stored W1 (mathematically identical, no in-kernel concat needed).
    h1 = (jnp.dot(mx, w1_ref[:C, :], preferred_element_type=jnp.float32)
          + jnp.dot(av, w1_ref[C:, :], preferred_element_type=jnp.float32)
          + b1_ref[...])
    h1 = _silu(h1)                                   # Dropout1d(0.2): identity (eval)

    h2 = jnp.dot(h1, w2_ref[...], preferred_element_type=jnp.float32) + b2_ref[...]
    h2 = _silu(h2)                                   # Dropout1d(0.1): identity (eval)

    out = jnp.dot(h2, w3_ref[...], preferred_element_type=jnp.float32) + b3_ref[...]
    o_ref[...] = out.astype(o_ref.dtype)


def _vmem_capacity_bytes():
    try:
        return int(pltpu.get_tpu_info().vmem_capacity_bytes)
    except Exception:
        return 64 * 1024 * 1024          # conservative per-core fallback (v7x)


def _pick_batch_tile(B, L, C, vmem_bytes):
    # Target ~1/8 of per-core VMEM per x buffer so double-buffering (2 bufs)
    # plus resident weights and the output stay well inside vmem_limit.
    per_buffer = vmem_bytes // 8
    tb = max(1, per_buffer // (L * C * 4))
    if B >= 8:
        tb = max(8, (tb // 8) * 8)       # keep output tiles sublane-aligned
    return min(B, tb)


def head_layer_forward(x, params, *, batch_tile=None):
    """x: (B, C, L) float32 (PyTorch NCL). Returns torch.squeeze(head(pooled)).

    The wrapper transposes x to (B, L, C) so channels are lane-dense inside
    the kernel; upstream producers should emit that layout directly to avoid
    the extra HBM pass (layout plumbing, not compute).
    """
    B, C, L = x.shape
    w1, b1, w2, b2, w3, b3 = params
    d_h1, d_h2, out_size = w1.shape[1], w2.shape[1], w3.shape[1]

    vmem_bytes = _vmem_capacity_bytes()
    tb = batch_tile if batch_tile is not None else _pick_batch_tile(B, L, C, vmem_bytes)
    grid = (pl.cdiv(B, tb),)

    x_nlc = jnp.transpose(x, (0, 2, 1))              # (B, L, C): C on lanes

    weight_bytes = 4 * (w1.size + b1.size + w2.size + b2.size + w3.size + b3.size)
    cost = pl.CostEstimate(
        flops=2 * B * (2 * C * d_h1 + d_h1 * d_h2 + d_h2 * out_size) + 2 * B * C * L,
        transcendentals=B * (d_h1 + d_h2),
        bytes_accessed=4 * B * C * L + weight_bytes + 4 * B * out_size,
    )

    out = pl.pallas_call(
        head_kernel,
        out_shape=jax.ShapeDtypeStruct((B, out_size), jnp.float32),
        grid=grid,
        in_specs=[
            pl.BlockSpec((tb, L, C), lambda i: (i, 0, 0)),    # streamed x tiles
            pl.BlockSpec(w1.shape, lambda i: (0, 0)),         # weights stay resident
            pl.BlockSpec(b1.shape, lambda i: (0, 0)),
            pl.BlockSpec(w2.shape, lambda i: (0, 0)),
            pl.BlockSpec(b2.shape, lambda i: (0, 0)),
            pl.BlockSpec(w3.shape, lambda i: (0, 0)),
            pl.BlockSpec(b3.shape, lambda i: (0, 0)),
        ],
        out_specs=pl.BlockSpec((tb, out_size), lambda i: (i, 0)),
        compiler_params=pltpu.CompilerParams(
            dimension_semantics=("parallel",),                # megacore shards batch
            vmem_limit_bytes=min(vmem_bytes // 2, 128 * 1024 * 1024),
        ),
        cost_estimate=cost,
    )(x_nlc, w1, b1, w2, b2, w3, b3)

    # torch.squeeze(out): drop any size-1 dims of the final result.
    return jnp.squeeze(out)


def init_params(key, final_ch, out_size):
    """Deterministic synthetic weights. pooling='all' -> 2 poolers.

    Linear weights are stored (in_features, out_features), so the kernel
    computes y = x @ W + b (equivalent to PyTorch's x @ W.T + b).
    """
    n_pool = 2
    d_in = final_ch * n_pool          # 2*C
    d_h1 = d_in // 2                  # C
    d_h2 = d_in // 4                  # C/2

    ks = jax.random.split(key, 6)
    scale = 0.05
    w1 = scale * jax.random.normal(ks[0], (d_in, d_h1), jnp.float32)
    b1 = scale * jax.random.normal(ks[1], (1, d_h1), jnp.float32)
    w2 = scale * jax.random.normal(ks[2], (d_h1, d_h2), jnp.float32)
    b2 = scale * jax.random.normal(ks[3], (1, d_h2), jnp.float32)
    w3 = scale * jax.random.normal(ks[4], (d_h2, out_size), jnp.float32)
    b3 = scale * jax.random.normal(ks[5], (1, out_size), jnp.float32)
    return (w1, b1, w2, b2, w3, b3)


def reference_forward(x, params):
    """Pure-JAX reference of the PyTorch forward (eval mode)."""
    w1, b1, w2, b2, w3, b3 = params
    mx = jnp.max(x, axis=-1)
    av = jnp.mean(x, axis=-1)
    h1 = jnp.concatenate([mx, av], axis=-1) @ w1 + b1
    h1 = h1 * jax.nn.sigmoid(h1)
    h2 = h1 @ w2 + b2
    h2 = h2 * jax.nn.sigmoid(h2)
    return jnp.squeeze(h2 @ w3 + b3)


if __name__ == "__main__":
    B, final_ch, L, out_size = 16, 32, 16, 8

    key = jax.random.PRNGKey(0)
    kx, kp = jax.random.split(key)
    x = jax.random.normal(kx, (B, final_ch, L), jnp.float32)
    params = init_params(kp, final_ch, out_size)

    # batch_tile=8 forces a 2-step grid at this small size so the pipelined /
    # gridded path is exercised; production sizes auto-pick a VMEM-sized tile.
    out = head_layer_forward(x, params, batch_tile=8)
    out = jax.block_until_ready(out)

    ref = reference_forward(x, params)
    assert out.shape == (B, out_size), out.shape
    assert jnp.allclose(out, ref, atol=1e-5, rtol=1e-5), "mismatch vs reference"

    print("KERNEL_OK")
</pallas_src>

<mosaic_0001>
module attributes {stable_mosaic.version = 11 : i64} {
  func.func @head_kernel(%arg0: i32, %arg1: memref<8x16x32xf32, #tpu.memory_space<vmem>>, %arg2: memref<64x32xf32, #tpu.memory_space<vmem>>, %arg3: memref<1x32xf32, #tpu.memory_space<vmem>>, %arg4: memref<32x16xf32, #tpu.memory_space<vmem>>, %arg5: memref<1x16xf32, #tpu.memory_space<vmem>>, %arg6: memref<16x8xf32, #tpu.memory_space<vmem>>, %arg7: memref<1x8xf32, #tpu.memory_space<vmem>>, %arg8: memref<8x8xf32, #tpu.memory_space<vmem>>) attributes {dimension_semantics = [#tpu.dimension_semantics<parallel>], iteration_bounds = array<i64: 2>, scalar_prefetch = 0 : i64, scratch_operands = 0 : i64, tpu.core_type = #tpu.core_type<tc>, window_params = [{transform_indices = @transform_0, window_bounds = array<i64: 8, 16, 32>}, {pipeline_mode = #tpu.pipeline_mode<synchronous>, transform_indices = @transform_1, window_bounds = array<i64: 64, 32>}, {pipeline_mode = #tpu.pipeline_mode<synchronous>, transform_indices = @transform_2, window_bounds = array<i64: 1, 32>}, {pipeline_mode = #tpu.pipeline_mode<synchronous>, transform_indices = @transform_3, window_bounds = array<i64: 32, 16>}, {pipeline_mode = #tpu.pipeline_mode<synchronous>, transform_indices = @transform_4, window_bounds = array<i64: 1, 16>}, {pipeline_mode = #tpu.pipeline_mode<synchronous>, transform_indices = @transform_5, window_bounds = array<i64: 16, 8>}, {pipeline_mode = #tpu.pipeline_mode<synchronous>, transform_indices = @transform_6, window_bounds = array<i64: 1, 8>}, {transform_indices = @transform_7, window_bounds = array<i64: 8, 8>}]} {
    %c0 = arith.constant 0 : index
    %c0_0 = arith.constant 0 : index
    %c0_1 = arith.constant 0 : index
    %0 = vector.load %arg1[%c0, %c0_0, %c0_1] : memref<8x16x32xf32, #tpu.memory_space<vmem>>, vector<8x16x32xf32>
    %cst = arith.constant dense<0xFF800000> : vector<8x32xf32>
    %1 = vector.multi_reduction <maximumf>, %0, %cst [1] : vector<8x16x32xf32> to vector<8x32xf32>
    %cst_2 = arith.constant dense<0.000000e+00> : vector<8x32xf32>
    %2 = vector.multi_reduction <add>, %0, %cst_2 [1] : vector<8x16x32xf32> to vector<8x32xf32>
    %cst_3 = arith.constant 6.250000e-02 : f32
    %3 = vector.broadcast %cst_3 : f32 to vector<8x32xf32>
    %4 = arith.mulf %2, %3 : vector<8x32xf32>
    %c0_4 = arith.constant 0 : index
    %c0_5 = arith.constant 0 : index
    %5 = vector.load %arg2[%c0_4, %c0_5] : memref<64x32xf32, #tpu.memory_space<vmem>>, vector<32x32xf32>
    %cst_6 = arith.constant dense<0.000000e+00> : vector<8x32xf32>
    %6 = tpu.matmul %1, %5, %cst_6 {dimension_numbers = #tpu.dot_dimension_numbers<[1], [0], [0], [1], [0, 0, 1, 1], [], []>} : vector<8x32xf32>, vector<32x32xf32>, vector<8x32xf32> -> vector<8x32xf32>
    %c32 = arith.constant 32 : index
    %c0_7 = arith.constant 0 : index
    %7 = vector.load %arg2[%c32, %c0_7] : memref<64x32xf32, #tpu.memory_space<vmem>>, vector<32x32xf32>
    %cst_8 = arith.constant dense<0.000000e+00> : vector<8x32xf32>
    %8 = tpu.matmul %4, %7, %cst_8 {dimension_numbers = #tpu.dot_dimension_numbers<[1], [0], [0], [1], [0, 0, 1, 1], [], []>} : vector<8x32xf32>, vector<32x32xf32>, vector<8x32xf32> -> vector<8x32xf32>
    %9 = arith.addf %6, %8 : vector<8x32xf32>
    %c0_9 = arith.constant 0 : index
    %c0_10 = arith.constant 0 : index
    %10 = vector.load %arg3[%c0_9, %c0_10] : memref<1x32xf32, #tpu.memory_space<vmem>>, vector<1x32xf32>
    %11 = vector.broadcast %10 : vector<1x32xf32> to vector<8x32xf32>
    %12 = arith.addf %9, %11 : vector<8x32xf32>
    %13 = arith.negf %12 : vector<8x32xf32>
    %14 = math.exp %13 : vector<8x32xf32>
    %cst_11 = arith.constant 1.000000e+00 : f32
    %15 = vector.broadcast %cst_11 : f32 to vector<8x32xf32>
    %16 = arith.addf %15, %14 : vector<8x32xf32>
    %17 = arith.divf %15, %16 : vector<8x32xf32>
    %18 = arith.mulf %12, %17 : vector<8x32xf32>
    %c0_12 = arith.constant 0 : index
    %c0_13 = arith.constant 0 : index
    %19 = vector.load %arg4[%c0_12, %c0_13] : memref<32x16xf32, #tpu.memory_space<vmem>>, vector<32x16xf32>
    %cst_14 = arith.constant dense<0.000000e+00> : vector<8x16xf32>
    %20 = tpu.matmul %18, %19, %cst_14 {dimension_numbers = #tpu.dot_dimension_numbers<[1], [0], [0], [1], [0, 0, 1, 1], [], []>} : vector<8x32xf32>, vector<32x16xf32>, vector<8x16xf32> -> vector<8x16xf32>
    %c0_15 = arith.constant 0 : index
    %c0_16 = arith.constant 0 : index
    %21 = vector.load %arg5[%c0_15, %c0_16] : memref<1x16xf32, #tpu.memory_space<vmem>>, vector<1x16xf32>
    %22 = vector.broadcast %21 : vector<1x16xf32> to vector<8x16xf32>
    %23 = arith.addf %20, %22 : vector<8x16xf32>
    %24 = arith.negf %23 : vector<8x16xf32>
    %25 = math.exp %24 : vector<8x16xf32>
    %cst_17 = arith.constant 1.000000e+00 : f32
    %26 = vector.broadcast %cst_17 : f32 to vector<8x16xf32>
    %27 = arith.addf %26, %25 : vector<8x16xf32>
    %28 = arith.divf %26, %27 : vector<8x16xf32>
    %29 = arith.mulf %23, %28 : vector<8x16xf32>
    %c0_18 = arith.constant 0 : index
    %c0_19 = arith.constant 0 : index
    %30 = vector.load %arg6[%c0_18, %c0_19] : memref<16x8xf32, #tpu.memory_space<vmem>>, vector<16x8xf32>
    %cst_20 = arith.constant dense<0.000000e+00> : vector<8x8xf32>
    %31 = tpu.matmul %29, %30, %cst_20 {dimension_numbers = #tpu.dot_dimension_numbers<[1], [0], [0], [1], [0, 0, 1, 1], [], []>} : vector<8x16xf32>, vector<16x8xf32>, vector<8x8xf32> -> vector<8x8xf32>
    %c0_21 = arith.constant 0 : index
    %c0_22 = arith.constant 0 : index
    %32 = vector.load %arg7[%c0_21, %c0_22] : memref<1x8xf32, #tpu.memory_space<vmem>>, vector<1x8xf32>
    %33 = vector.broadcast %32 : vector<1x8xf32> to vector<8x8xf32>
    %34 = arith.addf %31, %33 : vector<8x8xf32>
    %c0_23 = arith.constant 0 : index
    %c0_24 = arith.constant 0 : index
    %35 = vector.load %arg8[%c0_23, %c0_24] : memref<8x8xf32, #tpu.memory_space<vmem>>, vector<8x8xf32>
    tpu.vector_store %arg8[%c0_23, %c0_24], %34 {strides = array<i32>} : memref<8x8xf32, #tpu.memory_space<vmem>>, vector<8x8xf32>,
    return
  }
  func.func @transform_0(%arg0: i32) -> (i32, i32, i32) {
    %c0_i32 = arith.constant 0 : i32
    %c0_i32_0 = arith.constant 0 : i32
    %c0_i32_1 = arith.constant 0 : i32
    return %arg0, %c0_i32, %c0_i32_0 : i32, i32, i32
  }
  func.func @transform_1(%arg0: i32) -> (i32, i32) {
    %c0_i32 = arith.constant 0 : i32
    %c0_i32_0 = arith.constant 0 : i32
    %c0_i32_1 = arith.constant 0 : i32
    return %c0_i32, %c0_i32_0 : i32, i32
  }
  func.func @transform_2(%arg0: i32) -> (i32, i32) {
    %c0_i32 = arith.constant 0 : i32
    %c0_i32_0 = arith.constant 0 : i32
    %c0_i32_1 = arith.constant 0 : i32
    return %c0_i32, %c0_i32_0 : i32, i32
  }
  func.func @transform_3(%arg0: i32) -> (i32, i32) {
    %c0_i32 = arith.constant 0 : i32
    %c0_i32_0 = arith.constant 0 : i32
    %c0_i32_1 = arith.constant 0 : i32
    return %c0_i32, %c0_i32_0 : i32, i32
  }
  func.func @transform_4(%arg0: i32) -> (i32, i32) {
    %c0_i32 = arith.constant 0 : i32
    %c0_i32_0 = arith.constant 0 : i32
    %c0_i32_1 = arith.constant 0 : i32
    return %c0_i32, %c0_i32_0 : i32, i32
  }
  func.func @transform_5(%arg0: i32) -> (i32, i32) {
    %c0_i32 = arith.constant 0 : i32
    %c0_i32_0 = arith.constant 0 : i32
    %c0_i32_1 = arith.constant 0 : i32
    return %c0_i32, %c0_i32_0 : i32, i32
  }
  func.func @transform_6(%arg0: i32) -> (i32, i32) {
    %c0_i32 = arith.constant 0 : i32
    %c0_i32_0 = arith.constant 0 : i32
    %c0_i32_1 = arith.constant 0 : i32
    return %c0_i32, %c0_i32_0 : i32, i32
  }
  func.func @transform_7(%arg0: i32) -> (i32, i32) {
    %c0_i32 = arith.constant 0 : i32
    %c0_i32_0 = arith.constant 0 : i32
    return %arg0, %c0_i32 : i32, i32
  }
}

</mosaic_0001>

<llo_original>
// kernel: tpu_custom_call.1
$region0: #{tpu_custom_call.1}
  #allocation0 [shape = 'u32[]', space=smem, size = 0x4, offset = 0x4, fixed_abs, tag = 'smem constant byte address 0x4 - core index']
  #allocation1 [shape = 'u32[72,128]{1,0:T(1,128)}', space=vmem, size = 0x9000, scoped, tag = 'internal scratch']
  %s0 = inlined_call_operand.hbm [shape: f32[16,16,32], index: 0, kind: input, shape index: {}]
  %s1 = inlined_call_operand.vmem [shape: f32[64,32], index: 1, kind: input, shape index: {}]
  %s2 = inlined_call_operand.vmem [shape: f32[1,32], index: 2, kind: input, shape index: {}]
  %s3 = inlined_call_operand.vmem [shape: f32[32,16], index: 3, kind: input, shape index: {}]
  %s4 = inlined_call_operand.vmem [shape: f32[1,16], index: 4, kind: input, shape index: {}]
  %s5 = inlined_call_operand.vmem [shape: f32[16,8], index: 5, kind: input, shape index: {}]
  %s6 = inlined_call_operand.vmem [shape: f32[1,8], index: 6, kind: input, shape index: {}]
  %s7 = inlined_call_operand.vmem [shape: f32[16,8], index: 7, kind: output, shape index: {}]
  %s8 = sld [smem:[#allocation0]]
  $region65: #{tpu_custom_call.1} parent=0
    _
  %s10 = ssub.s32 1, %s8
  %s11 = scalar_select 0, %s10, %s8
  $region1: #{tpu_custom_call.1} parent=0
    #allocation2 [shape = 'u8[131072]{0}', space=vmem, size = 0x20000, scoped, tag = 'input window, operand 0']
    #allocation3 [shape = 's32[2]{0}', space=sflag, size = 0x8, scoped, tag = 'scoped memory for tpu_custom_call.1']
    %12 = vsyncpa [#allocation3], 0
    %s13 = scalar_lea.sflag [#allocation3], 1
    %14 = vsyncpa %s13, 0
    loop: start=0, step=1, limit=4
    $region2: #{tpu_custom_call.1} parent=1 // loop_pre_header
      _
    $region3: #{tpu_custom_call.1} parent=1 // loop_header
      %s16 = sphi 0, %s20
      %p17 = scmp.ge.s32.totalorder %s16, 4
      %s26 = sphi 0, %s28
      %s29 = sphi 0, %s26
      %s30 = sphi 0, %s29
      %s46 = sphi 0, %s30
      %s50 = sphi 0, %s50
      %s52 = sphi 0, %s50
      %s53 = sphi 0, %s52
      %s67 = sphi 0, %s53
      %s71 = sphi 0, %s71
      %s73 = sphi 0, %s71
      %s74 = sphi 0, %s73
      %s88 = sphi 0, %s74
      %s92 = sphi 0, %s92
      %s94 = sphi 0, %s92
      %s95 = sphi 0, %s94
      %s109 = sphi 0, %s95
      %s113 = sphi 0, %s113
      %s115 = sphi 0, %s113
      %s116 = sphi 0, %s115
      %s130 = sphi 0, %s116
      %s134 = sphi 0, %s134
      %s136 = sphi 0, %s134
      %s137 = sphi 0, %s136
      %s151 = sphi 0, %s137
      %s155 = sphi 0, %s155
      %s157 = sphi 0, %s155
      %s158 = sphi 0, %s157
      %s172 = sphi 0, %s158
      %s178 = sphi 0, %s180
      %s181 = sphi 0, %s178
      %s182 = sphi 0, %s181
      %s198 = sphi 0, %s182
    $region4: #{tpu_custom_call.1} parent=1 // loop_header_branch
      %19 = sbr.rel (%p17) target = $region8
    $region5: #{tpu_custom_call.1} parent=1 // loop_body
      %s21 = ssub.s32 %s16, 1
      %s22 = ssub.s32 %s16, 2
      %s23 = sadd.s32 %s16, 1
      %s24 = ssub.s32 %s16, %s23
      %p25 = scmp.eq.s32.totalorder %s24, 0
      %s27 = sadd.s32 %s26, 1
      %s28 = scalar_select %p25, %s26, %s27
      %p31 = pneg %p25
      %p32 = scmp.eq.s32.totalorder %s16, 1
      %p33 = por %p31, %p32
      %p34 = scmp.ne.s32.totalorder %s26, %s29
      %p35 = scmp.eq.s32.totalorder %s16, 0
      %p36 = por %p34, %p35
      %p37 = scmp.ne.s32.totalorder %s26, %s29
      %p38 = scmp.eq.s32.totalorder %s21, 1
      %p39 = por %p37, %p38
      %p40 = scmp.ne.s32.totalorder %s29, %s30
      %p41 = scmp.eq.s32.totalorder %s21, 0
      %p42 = por %p40, %p41
      %p43 = scmp.ne.s32.totalorder %s29, %s30
      %p44 = scmp.eq.s32.totalorder %s22, 1
      %p45 = por %p43, %p44
      %p47 = scmp.ne.s32.totalorder %s30, %s46
      %p48 = scmp.eq.s32.totalorder %s22, 0
      %p49 = por %p47, %p48
      %s51 = sadd.s32 %s50, 1
      %p54 = scmp.eq.s32.totalorder %s16, 1
      %p55 = scmp.ne.s32.totalorder %s50, %s52
      %p56 = scmp.eq.s32.totalorder %s16, 0
      %p57 = por %p55, %p56
      %p58 = scmp.ne.s32.totalorder %s50, %s52
      %p59 = scmp.eq.s32.totalorder %s21, 1
      %p60 = por %p58, %p59
      %p61 = scmp.ne.s32.totalorder %s52, %s53
      %p62 = scmp.eq.s32.totalorder %s21, 0
      %p63 = por %p61, %p62
      %p64 = scmp.ne.s32.totalorder %s52, %s53
      %p65 = scmp.eq.s32.totalorder %s22, 1
      %p66 = por %p64, %p65
      %p68 = scmp.ne.s32.totalorder %s53, %s67
      %p69 = scmp.eq.s32.totalorder %s22, 0
      %p70 = por %p68, %p69
      %s72 = sadd.s32 %s71, 1
      %p75 = scmp.eq.s32.totalorder %s16, 1
      %p76 = scmp.ne.s32.totalorder %s71, %s73
      %p77 = scmp.eq.s32.totalorder %s16, 0
      %p78 = por %p76, %p77
      %p79 = scmp.ne.s32.totalorder %s71, %s73
      %p80 = scmp.eq.s32.totalorder %s21, 1
      %p81 = por %p79, %p80
      %p82 = scmp.ne.s32.totalorder %s73, %s74
      %p83 = scmp.eq.s32.totalorder %s21, 0
      %p84 = por %p82, %p83
      %p85 = scmp.ne.s32.totalorder %s73, %s74
      %p86 = scmp.eq.s32.totalorder %s22, 1
      %p87 = por %p85, %p86
      %p89 = scmp.ne.s32.totalorder %s74, %s88
      %p90 = scmp.eq.s32.totalorder %s22, 0
      %p91 = por %p89, %p90
      %s93 = sadd.s32 %s92, 1
      %p96 = scmp.eq.s32.totalorder %s16, 1
      %p97 = scmp.ne.s32.totalorder %s92, %s94
      %p98 = scmp.eq.s32.totalorder %s16, 0
      %p99 = por %p97, %p98
      %p100 = scmp.ne.s32.totalorder %s92, %s94
      %p101 = scmp.eq.s32.totalorder %s21, 1
      %p102 = por %p100, %p101
      %p103 = scmp.ne.s32.totalorder %s94, %s95
      %p104 = scmp.eq.s32.totalorder %s21, 0
      %p105 = por %p103, %p104
      %p106 = scmp.ne.s32.totalorder %s94, %s95
      %p107 = scmp.eq.s32.totalorder %s22, 1
      %p108 = por %p106, %p107
      %p110 = scmp.ne.s32.totalorder %s95, %s109
      %p111 = scmp.eq.s32.totalorder %s22, 0
      %p112 = por %p110, %p111
      %s114 = sadd.s32 %s113, 1
      %p117 = scmp.eq.s32.totalorder %s16, 1
      %p118 = scmp.ne.s32.totalorder %s113, %s115
      %p119 = scmp.eq.s32.totalorder %s16, 0
      %p120 = por %p118, %p119
      %p121 = scmp.ne.s32.totalorder %s113, %s115
      %p122 = scmp.eq.s32.totalorder %s21, 1
      %p123 = por %p121, %p122
      %p124 = scmp.ne.s32.totalorder %s115, %s116
      %p125 = scmp.eq.s32.totalorder %s21, 0
      %p126 = por %p124, %p125
      %p127 = scmp.ne.s32.totalorder %s115, %s116
      %p128 = scmp.eq.s32.totalorder %s22, 1
      %p129 = por %p127, %p128
      %p131 = scmp.ne.s32.totalorder %s116, %s130
      %p132 = scmp.eq.s32.totalorder %s22, 0
      %p133 = por %p131, %p132
      %s135 = sadd.s32 %s134, 1
      %p138 = scmp.eq.s32.totalorder %s16, 1
      %p139 = scmp.ne.s32.totalorder %s134, %s136
      %p140 = scmp.eq.s32.totalorder %s16, 0
      %p141 = por %p139, %p140
      %p142 = scmp.ne.s32.totalorder %s134, %s136
      %p143 = scmp.eq.s32.totalorder %s21, 1
      %p144 = por %p142, %p143
      %p145 = scmp.ne.s32.totalorder %s136, %s137
      %p146 = scmp.eq.s32.totalorder %s21, 0
      %p147 = por %p145, %p146
      %p148 = scmp.ne.s32.totalorder %s136, %s137
      %p149 = scmp.eq.s32.totalorder %s22, 1
      %p150 = por %p148, %p149
      %p152 = scmp.ne.s32.totalorder %s137, %s151
      %p153 = scmp.eq.s32.totalorder %s22, 0
      %p154 = por %p152, %p153
      %s156 = sadd.s32 %s155, 1
      %p159 = scmp.eq.s32.totalorder %s16, 1
      %p160 = scmp.ne.s32.totalorder %s155, %s157
      %p161 = scmp.eq.s32.totalorder %s16, 0
      %p162 = por %p160, %p161
      %p163 = scmp.ne.s32.totalorder %s155, %s157
      %p164 = scmp.eq.s32.totalorder %s21, 1
      %p165 = por %p163, %p164
      %p166 = scmp.ne.s32.totalorder %s157, %s158
      %p167 = scmp.eq.s32.totalorder %s21, 0
      %p168 = por %p166, %p167
      %p169 = scmp.ne.s32.totalorder %s157, %s158
      %p170 = scmp.eq.s32.totalorder %s22, 1
      %p171 = por %p169, %p170
      %p173 = scmp.ne.s32.totalorder %s158, %s172
      %p174 = scmp.eq.s32.totalorder %s22, 0
      %p175 = por %p173, %p174
      %s176 = ssub.s32 %s16, %s23
      %p177 = scmp.eq.s32.totalorder %s176, 0
      %s179 = sadd.s32 %s178, 1
      %s180 = scalar_select %p177, %s178, %s179
      %p183 = pneg %p177
      %p184 = scmp.eq.s32.totalorder %s16, 1
      %p185 = por %p183, %p184
      %p186 = scmp.ne.s32.totalorder %s178, %s181
      %p187 = scmp.eq.s32.totalorder %s16, 0
      %p188 = por %p186, %p187
      %p189 = scmp.ne.s32.totalorder %s178, %s181
      %p190 = scmp.eq.s32.totalorder %s21, 1
      %p191 = por %p189, %p190
      %p192 = scmp.ne.s32.totalorder %s181, %s182
      %p193 = scmp.eq.s32.totalorder %s21, 0
      %p194 = por %p192, %p193
      %p195 = scmp.ne.s32.totalorder %s181, %s182
      %p196 = scmp.eq.s32.totalorder %s22, 1
      %p197 = por %p195, %p196
      %p199 = scmp.ne.s32.totalorder %s182, %s198
      %p200 = scmp.eq.s32.totalorder %s22, 0
      %p201 = por %p199, %p200
      %p202 = scmp.le.s32.totalorder 1, %s16
      %p203 = scmp.lt.s32.totalorder %s16, 3
      %p204 = pnand %p202, %p203
      %p205 = pneg %p204
      // Predicated region
      $region9: #{tpu_custom_call.1} parent=5 // pred_check
        _
      $region10: #{tpu_custom_call.1} parent=5 // pred_check_branch
        %207 = sbr.rel (%p204) target = $region12
      $region11: #{tpu_custom_call.1} parent=5 // pred_region
        %s208 = ssub.s32 %s16, 1
        // Predicated region
        $region13: #{tpu_custom_call.1} parent=11 // pred_check
          %p209 = pneg %p63
        $region14: #{tpu_custom_call.1} parent=11 // pred_check_branch
          %211 = sbr.rel (%p209) target = $region16
        $region15: #{tpu_custom_call.1} parent=11 // pred_region
          _
        $region16: #{tpu_custom_call.1} parent=11 // pred_fallthru
          _
        // Predicated region
        $region17: #{tpu_custom_call.1} parent=11 // pred_check
          %p212 = pneg %p84
        $region18: #{tpu_custom_call.1} parent=11 // pred_check_branch
          %214 = sbr.rel (%p212) target = $region20
        $region19: #{tpu_custom_call.1} parent=11 // pred_region
          _
        $region20: #{tpu_custom_call.1} parent=11 // pred_fallthru
          _
        // Predicated region
        $region21: #{tpu_custom_call.1} parent=11 // pred_check
          %p215 = pneg %p105
        $region22: #{tpu_custom_call.1} parent=11 // pred_check_branch
          %217 = sbr.rel (%p215) target = $region24
        $region23: #{tpu_custom_call.1} parent=11 // pred_region
          _
        $region24: #{tpu_custom_call.1} parent=11 // pred_fallthru
          _
        // Predicated region
        $region25: #{tpu_custom_call.1} parent=11 // pred_check
          %p218 = pneg %p126
        $region26: #{tpu_custom_call.1} parent=11 // pred_check_branch
          %220 = sbr.rel (%p218) target = $region28
        $region27: #{tpu_custom_call.1} parent=11 // pred_region
          _
        $region28: #{tpu_custom_call.1} parent=11 // pred_fallthru
          _
        // Predicated region
        $region29: #{tpu_custom_call.1} parent=11 // pred_check
          %p221 = pneg %p147
        $region30: #{tpu_custom_call.1} parent=11 // pred_check_branch
          %223 = sbr.rel (%p221) target = $region32
        $region31: #{tpu_custom_call.1} parent=11 // pred_region
          _
        $region32: #{tpu_custom_call.1} parent=11 // pred_fallthru
          _
        // Predicated region
        $region33: #{tpu_custom_call.1} parent=11 // pred_check
          %p224 = pneg %p168
        $region34: #{tpu_custom_call.1} parent=11 // pred_check_branch
          %226 = sbr.rel (%p224) target = $region36
        $region35: #{tpu_custom_call.1} parent=11 // pred_region
          _
        $region36: #{tpu_custom_call.1} parent=11 // pred_fallthru
          _
      $region12: #{tpu_custom_call.1} parent=5 // pred_fallthru
        _
      %p227 = scmp.lt.s32.totalorder %s16, 2
      // Predicated region
      $region37: #{tpu_custom_call.1} parent=5 // pred_check
        %p228 = pneg %p227
      $region38: #{tpu_custom_call.1} parent=5 // pred_check_branch
        %230 = sbr.rel (%p228) target = $region40
      $region39: #{tpu_custom_call.1} parent=5 // pred_region
        // Predicated region
        $region41: #{tpu_custom_call.1} parent=39 // pred_check
          %p231 = pneg %p36
        $region42: #{tpu_custom_call.1} parent=39 // pred_check_branch
          %233 = sbr.rel (%p231) target = $region44
        $region43: #{tpu_custom_call.1} parent=39 // pred_region
          %s234 = sand.u32 %s26, 1
          %s235 = scalar_lea.sflag [#allocation3], %s234
          %s236 = sand.u32 %s26, 1
          %s237 = smul.addr %s236, 128
          %s238 = scalar_lea.vmem [#allocation2], %s237
          %s239 = smul.u32 8, %s16
          %241 = vsyncadd %s235, 0
          %s242 = smul.addr %s239, 2
          %s243 = smul.addr %s242, 8
          %s244 = scalar_lea.hbm %s0, %s243
          %s245 = sshll.u32 %s244, 4
          %s246 = int_to_ptr.hbm [resolvable:$true] %s245
          %s247 = sshll.u32 %s238, 4
          %s248 = int_to_ptr.vmem [resolvable:$true] %s247
          %253 = dma.hbm_to_vmem [thread:$0]  %s246, 2048, %s248, %s235, 128, 128, 8
        $region44: #{tpu_custom_call.1} parent=39 // pred_fallthru
          _
      $region40: #{tpu_custom_call.1} parent=5 // pred_fallthru
        _
      %p254 = scmp.le.s32.totalorder 1, %s16
      %p255 = scmp.lt.s32.totalorder %s16, 3
      %p256 = pnand %p254, %p255
      %p257 = pneg %p256
      // Predicated region
      $region45: #{tpu_custom_call.1} parent=5 // pred_check
        _
      $region46: #{tpu_custom_call.1} parent=5 // pred_check_branch
        %259 = sbr.rel (%p256) target = $region48
      $region47: #{tpu_custom_call.1} parent=5 // pred_region
        %s260 = ssub.s32 %s16, 1
        %s261 = sand.u32 %s29, 1
        %s262 = scalar_lea.sflag [#allocation3], %s261
        %s263 = sand.u32 %s29, 1
        %s264 = smul.addr %s263, 128
        %s265 = scalar_lea.vmem [#allocation2], %s264
        // Predicated region
        $region49: #{tpu_custom_call.1} parent=47 // pred_check
          %p266 = pneg %p42
        $region50: #{tpu_custom_call.1} parent=47 // pred_check_branch
          %268 = sbr.rel (%p266) target = $region52
        $region51: #{tpu_custom_call.1} parent=47 // pred_region
          %270 = dma.done %s262, 2048
        $region52: #{tpu_custom_call.1} parent=47 // pred_fallthru
          _
        %s271 = sand.u32 %s29, 1
        %s272 = scalar_lea.sflag [#allocation3], %s271
        %s273 = sand.u32 %s29, 1
        %s274 = smul.addr %s273, 128
        %s275 = scalar_lea.vmem [#allocation2], %s274
        %p276 = pneg %p42
        %p277 = pneg %p39
        %p278 = pneg %p63
        %p279 = pneg %p60
        %p280 = pneg %p84
        %p281 = pneg %p81
        %p282 = pneg %p105
        %p283 = pneg %p102
        %p284 = pneg %p126
        %p285 = pneg %p123
        %p286 = pneg %p147
        %p287 = pneg %p144
        %p288 = pneg %p168
        %p289 = pneg %p165
        %p290 = pneg %p194
        %p291 = pneg %p191
        %p292 = scmp.lt.s32.totalorder %s21, 1
        %s293 = scalar_select %p292, %s21, 1
        %s294 = smul.addr %s293, 8
        %s295 = scalar_lea.vmem %s7, %s294
        %s296 = smul.u32 8, %s21
        %p297 = scmp.lt.s32.totalorder %s21, 1
        %s298 = scalar_select %p297, %s21, 1
        %s299 = smul.addr %s298, 8
        %s300 = scalar_lea.vmem %s7, %s299
        %v301 = vld [vmem:[%s265] sm:$0xff]
        %v302 = vld [vmem:[%s265 + $0x8] sm:$0xff]
        %v303 = vld [vmem:[%s265 + $0x10] sm:$0xff]
        %v304 = vld [vmem:[%s265 + $0x18] sm:$0xff]
        %v305 = vld [vmem:[%s265 + $0x20] sm:$0xff]
        %v306 = vld [vmem:[%s265 + $0x28] sm:$0xff]
        %v307 = vld [vmem:[%s265 + $0x30] sm:$0xff]
        %v308 = vld [vmem:[%s265 + $0x38] sm:$0xff]
        %v309 = vld [vmem:[%s265 + $0x40] sm:$0xff]
        %v310 = vld [vmem:[%s265 + $0x48] sm:$0xff]
        %v311 = vld [vmem:[%s265 + $0x50] sm:$0xff]
        %v312 = vld [vmem:[%s265 + $0x58] sm:$0xff]
        %v313 = vld [vmem:[%s265 + $0x60] sm:$0xff]
        %v314 = vld [vmem:[%s265 + $0x68] sm:$0xff]
        %v315 = vld [vmem:[%s265 + $0x70] sm:$0xff]
        %v316 = vld [vmem:[%s265 + $0x78] sm:$0xff]
        %vm317 = vcmask 261120
        %v318 = vsel %vm317, %v301, -inf
        %v319 = vsel %vm317, %v302, -inf
        %v320 = vmax.f32 %v318, %v319
        %v321 = vrot.slane %v320, 4
        %v322 = vmax.f32 %v320, %v321
        %v323 = vrot.slane %v322, 2
        %v324 = vmax.f32 %v322, %v323
        %v325 = vrot.slane %v324, 1
        %v326 = vmax.f32 %v324, %v325
        %v327 = vsel %vm317, %v303, -inf
        %v328 = vsel %vm317, %v304, -inf
        %v329 = vmax.f32 %v327, %v328
        %v330 = vrot.slane %v329, 4
        %v331 = vmax.f32 %v329, %v330
        %v332 = vrot.slane %v331, 2
        %v333 = vmax.f32 %v331, %v332
        %v334 = vrot.slane %v333, 1
        %v335 = vmax.f32 %v333, %v334
        %v336 = vsel %vm317, %v305, -inf
        %v337 = vsel %vm317, %v306, -inf
        %v338 = vmax.f32 %v336, %v337
        %v339 = vrot.slane %v338, 4
        %v340 = vmax.f32 %v338, %v339
        %v341 = vrot.slane %v340, 2
        %v342 = vmax.f32 %v340, %v341
        %v343 = vrot.slane %v342, 1
        %v344 = vmax.f32 %v342, %v343
        %v345 = vsel %vm317, %v307, -inf
        %v346 = vsel %vm317, %v308, -inf
        %v347 = vmax.f32 %v345, %v346
        %v348 = vrot.slane %v347, 4
        %v349 = vmax.f32 %v347, %v348
        %v350 = vrot.slane %v349, 2
        %v351 = vmax.f32 %v349, %v350
        %v352 = vrot.slane %v351, 1
        %v353 = vmax.f32 %v351, %v352
        %v354 = vsel %vm317, %v309, -inf
        %v355 = vsel %vm317, %v310, -inf
        %v356 = vmax.f32 %v354, %v355
        %v357 = vrot.slane %v356, 4
        %v358 = vmax.f32 %v356, %v357
        %v359 = vrot.slane %v358, 2
        %v360 = vmax.f32 %v358, %v359
        %v361 = vrot.slane %v360, 1
        %v362 = vmax.f32 %v360, %v361
        %v363 = vsel %vm317, %v311, -inf
        %v364 = vsel %vm317, %v312, -inf
        %v365 = vmax.f32 %v363, %v364
        %v366 = vrot.slane %v365, 4
        %v367 = vmax.f32 %v365, %v366
        %v368 = vrot.slane %v367, 2
        %v369 = vmax.f32 %v367, %v368
        %v370 = vrot.slane %v369, 1
        %v371 = vmax.f32 %v369, %v370
        %v372 = vsel %vm317, %v313, -inf
        %v373 = vsel %vm317, %v314, -inf
        %v374 = vmax.f32 %v372, %v373
        %v375 = vrot.slane %v374, 4
        %v376 = vmax.f32 %v374, %v375
        %v377 = vrot.slane %v376, 2
        %v378 = vmax.f32 %v376, %v377
        %v379 = vrot.slane %v378, 1
        %v380 = vmax.f32 %v378, %v379
        %v381 = vsel %vm317, %v315, -inf
        %v382 = vsel %vm317, %v316, -inf
        %v383 = vmax.f32 %v381, %v382
        %v384 = vrot.slane %v383, 4
        %v385 = vmax.f32 %v383, %v384
        %v386 = vrot.slane %v385, 2
        %v387 = vmax.f32 %v385, %v386
        %v388 = vrot.slane %v387, 1
        %v389 = vmax.f32 %v387, %v388
        %v390 = vsel %vm317, %v301, 0.0
        %v391 = vsel %vm317, %v302, 0.0
        %v392 = vadd.f32 %v390, %v391
        %v393 = vrot.slane %v392, 4
        %v394 = vadd.f32 %v392, %v393
        %v395 = vrot.slane %v394, 2
        %v396 = vadd.f32 %v394, %v395
        %v397 = vrot.slane %v396, 1
        %v398 = vadd.f32 %v396, %v397
        %v399 = vsel %vm317, %v303, 0.0
        %v400 = vsel %vm317, %v304, 0.0
        %v401 = vadd.f32 %v399, %v400
        %v402 = vrot.slane %v401, 4
        %v403 = vadd.f32 %v401, %v402
        %v404 = vrot.slane %v403, 2
        %v405 = vadd.f32 %v403, %v404
        %v406 = vrot.slane %v405, 1
        %v407 = vadd.f32 %v405, %v406
        %v408 = vsel %vm317, %v305, 0.0
        %v409 = vsel %vm317, %v306, 0.0
        %v410 = vadd.f32 %v408, %v409
        %v411 = vrot.slane %v410, 4
        %v412 = vadd.f32 %v410, %v411
        %v413 = vrot.slane %v412, 2
        %v414 = vadd.f32 %v412, %v413
        %v415 = vrot.slane %v414, 1
        %v416 = vadd.f32 %v414, %v415
        %v417 = vsel %vm317, %v307, 0.0
        %v418 = vsel %vm317, %v308, 0.0
        %v419 = vadd.f32 %v417, %v418
        %v420 = vrot.slane %v419, 4
        %v421 = vadd.f32 %v419, %v420
        %v422 = vrot.slane %v421, 2
        %v423 = vadd.f32 %v421, %v422
        %v424 = vrot.slane %v423, 1
        %v425 = vadd.f32 %v423, %v424
        %v426 = vsel %vm317, %v309, 0.0
        %v427 = vsel %vm317, %v310, 0.0
        %v428 = vadd.f32 %v426, %v427
        %v429 = vrot.slane %v428, 4
        %v430 = vadd.f32 %v428, %v429
        %v431 = vrot.slane %v430, 2
        %v432 = vadd.f32 %v430, %v431
        %v433 = vrot.slane %v432, 1
        %v434 = vadd.f32 %v432, %v433
        %v435 = vsel %vm317, %v311, 0.0
        %v436 = vsel %vm317, %v312, 0.0
        %v437 = vadd.f32 %v435, %v436
        %v438 = vrot.slane %v437, 4
        %v439 = vadd.f32 %v437, %v438
        %v440 = vrot.slane %v439, 2
        %v441 = vadd.f32 %v439, %v440
        %v442 = vrot.slane %v441, 1
        %v443 = vadd.f32 %v441, %v442
        %v444 = vsel %vm317, %v313, 0.0
        %v445 = vsel %vm317, %v314, 0.0
        %v446 = vadd.f32 %v444, %v445
        %v447 = vrot.slane %v446, 4
        %v448 = vadd.f32 %v446, %v447
        %v449 = vrot.slane %v448, 2
        %v450 = vadd.f32 %v448, %v449
        %v451 = vrot.slane %v450, 1
        %v452 = vadd.f32 %v450, %v451
        %v453 = vsel %vm317, %v315, 0.0
        %v454 = vsel %vm317, %v316, 0.0
        %v455 = vadd.f32 %v453, %v454
        %v456 = vrot.slane %v455, 4
        %v457 = vadd.f32 %v455, %v456
        %v458 = vrot.slane %v457, 2
        %v459 = vadd.f32 %v457, %v458
        %v460 = vrot.slane %v459, 1
        %v461 = vadd.f32 %v459, %v460
        %v462 = vmul.f32 %v398, 0.0625
        %v463 = vmul.f32 %v407, 0.0625
        %v464 = vmul.f32 %v416, 0.0625
        %v465 = vmul.f32 %v425, 0.0625
        %v466 = vmul.f32 %v434, 0.0625
        %v467 = vmul.f32 %v443, 0.0625
        %v468 = vmul.f32 %v452, 0.0625
        %v469 = vmul.f32 %v461, 0.0625
        %v470 = vld [vmem:[%s1] sm:$0xff]
        %v471 = vld [vmem:[%s1 + $0x8] sm:$0xff]
        %v472 = vld [vmem:[%s1 + $0x10] sm:$0xff]
        %v473 = vld [vmem:[%s1 + $0x18] sm:$0xff]
        %v474 = vld [vmem:[%s1 + $0x20] sm:$0xff]
        %v475 = vld [vmem:[%s1 + $0x28] sm:$0xff]
        %v476 = vld [vmem:[%s1 + $0x30] sm:$0xff]
        %v477 = vld [vmem:[%s1 + $0x38] sm:$0xff]
        %vm486 = vcmask 1041409
        %v487 = vsel %vm486, %v463, %v462
        %vm488 = vcmask 1042434
        %v489 = vsel %vm488, %v464, %v487
        %vm490 = vcmask 1043459
        %v491 = vsel %vm490, %v465, %v489
        %vm492 = vcmask 1044484
        %v493 = vsel %vm492, %v466, %v491
        %vm494 = vcmask 1045509
        %v495 = vsel %vm494, %v467, %v493
        %vm496 = vcmask 1046534
        %v497 = vsel %vm496, %v468, %v495
        %vm498 = vcmask 1047559
        %v499 = vsel %vm498, %v469, %v497
        %v500 = vsel %vm317, %v499, 0
        %502 = vmatpush.msra.mxu0 0.0
        %503 = vmatpush.msra.mxu0 0.0
        %504 = vmatpush.msra.mxu0 0.0
        %505 = vmatpush.msra.mxu0 0.0
        %506 = vmatpush.msra.mxu0 0.0
        %507 = vmatpush.msra.mxu0 0.0
        %508 = vmatpush.msra.mxu0 0.0
        %509 = vmatpush.msra.mxu0 0.0
        %510 = vmatpush.msra.mxu0 0.0
        %511 = vmatpush.msra.mxu0 0.0
        %512 = vmatpush.msra.mxu0 0.0
        %513 = vmatpush.msra.mxu0 0.0
        %514 = vmatpush.msra.mxu0 %v477
        %515 = vmatpush.msra.mxu0 %v476
        %516 = vmatpush.msra.mxu0 %v475
        %517 = vmatpush.msra.mxu0 %v474
        %518 = vmatmul.f32.gmra.mxu0 %v500
        %v519 = vpop.f32.mrf.mxu0
        %v520 = vadd.f32 0.0, %v519
        %521 = vdwg.mxu0
        %v530 = vsel %vm486, %v335, %v326
        %v531 = vsel %vm488, %v344, %v530
        %v532 = vsel %vm490, %v353, %v531
        %v533 = vsel %vm492, %v362, %v532
        %v534 = vsel %vm494, %v371, %v533
        %v535 = vsel %vm496, %v380, %v534
        %v536 = vsel %vm498, %v389, %v535
        %v537 = vsel %vm317, %v536, 0
        %539 = vmatpush.msra.mxu0 0.0
        %540 = vmatpush.msra.mxu0 0.0
        %541 = vmatpush.msra.mxu0 0.0
        %542 = vmatpush.msra.mxu0 0.0
        %543 = vmatpush.msra.mxu0 0.0
        %544 = vmatpush.msra.mxu0 0.0
        %545 = vmatpush.msra.mxu0 0.0
        %546 = vmatpush.msra.mxu0 0.0
        %547 = vmatpush.msra.mxu0 0.0
        %548 = vmatpush.msra.mxu0 0.0
        %549 = vmatpush.msra.mxu0 0.0
        %550 = vmatpush.msra.mxu0 0.0
        %551 = vmatpush.msra.mxu0 %v473
        %552 = vmatpush.msra.mxu0 %v472
        %553 = vmatpush.msra.mxu0 %v471
        %554 = vmatpush.msra.mxu0 %v470
        %555 = vmatmul.f32.gmra.mxu0 %v537
        %v556 = vpop.f32.mrf.mxu0
        %v557 = vadd.f32 %v520, %v556
        %558 = vdwg.mxu0
        %v559 = vld [vmem:[%s2] sm:$0x1]
        %v561 = vperm.slane %v559, 0
        %v563 = vadd.f32 %v557, %v561
        %v564 = vxor.u32 %v563, 2147483648
        %v565 = vmul.f32 %v564, 1.442695
        %v566 = vpow.pop %v565
        %v567 = vadd.f32 %v566, 1.0
        %v568 = vrcp.pop %v567
        %v569 = vmul.f32 %v567, %v568
        %v570 = vsub.f32 1.0, %v569
        %v571 = vmul.f32 %v568, %v570
        %v572 = vadd.f32 %v568, %v571
        %vm573 = vweird.f32 %v567
        %vm574 = vweird.f32 %v568
        %vm575 = vmor %vm573, %vm574
        %v576 = vsel %vm575, %v568, %v572
        %v577 = vand.u32 2147483647, %v567
        %vm578 = vcmp.eq.f32.partialorder %v577, 8.507059e+37
        %v579 = vand.u32 %v567, 2147483648
        %v580 = vor.u32 1.1754944e-38, %v579
        %v581 = vsel %vm578, %v580, %v576
        %v582 = vmul.f32 1.0, %v581
        %v583 = vmul.f32 %v563, %v582
        %v584 = vld [vmem:[%s3] sm:$0xff]
        %v585 = vld [vmem:[%s3 + $0x8] sm:$0xff]
        %v586 = vld [vmem:[%s3 + $0x10] sm:$0xff]
        %v587 = vld [vmem:[%s3 + $0x18] sm:$0xff]
        %v588 = vld [vmem:[%s4] sm:$0x1]
        %v590 = vperm.slane %v588, 0
        %v593 = vsel %vm317, %v583, 0
        %595 = vmatpush.msra.mxu0 0.0
        %596 = vmatpush.msra.mxu0 0.0
        %597 = vmatpush.msra.mxu0 0.0
        %598 = vmatpush.msra.mxu0 0.0
        %599 = vmatpush.msra.mxu0 0.0
        %600 = vmatpush.msra.mxu0 0.0
        %601 = vmatpush.msra.mxu0 0.0
        %602 = vmatpush.msra.mxu0 0.0
        %603 = vmatpush.msra.mxu0 0.0
        %604 = vmatpush.msra.mxu0 0.0
        %605 = vmatpush.msra.mxu0 0.0
        %606 = vmatpush.msra.mxu0 0.0
        %607 = vmatpush.msra.mxu0 %v587
        %608 = vmatpush.msra.mxu0 %v586
        %609 = vmatpush.msra.mxu0 %v585
        %610 = vmatpush.msra.mxu0 %v584
        %611 = vmatmul.f32.gmra.mxu0 %v593
        %v612 = vpop.f32.mrf.mxu0
        %v613 = vadd.f32 %v590, %v612
        %614 = vdwg.mxu0
        %v615 = vxor.u32 %v613, 2147483648
        %v616 = vmul.f32 %v615, 1.442695
        %v617 = vpow.pop %v616
        %v618 = vadd.f32 %v617, 1.0
        %v619 = vrcp.pop %v618
        %v620 = vmul.f32 %v618, %v619
        %v621 = vsub.f32 1.0, %v620
        %v622 = vmul.f32 %v619, %v621
        %v623 = vadd.f32 %v619, %v622
        %vm624 = vweird.f32 %v618
        %vm625 = vweird.f32 %v619
        %vm626 = vmor %vm624, %vm625
        %v627 = vsel %vm626, %v619, %v623
        %v628 = vand.u32 2147483647, %v618
        %vm629 = vcmp.eq.f32.partialorder %v628, 8.507059e+37
        %v630 = vand.u32 %v618, 2147483648
        %v631 = vor.u32 1.1754944e-38, %v630
        %v632 = vsel %vm629, %v631, %v627
        %v633 = vmul.f32 1.0, %v632
        %v634 = vmul.f32 %v613, %v633
        %v635 = vld [vmem:[%s5] sm:$0xff]
        %v636 = vld [vmem:[%s5 + $0x8] sm:$0xff]
        %v637 = vld [vmem:[%s6] sm:$0x1]
        %v639 = vperm.slane %v637, 0
        %vm641 = vcmask 130048
        %v643 = vsel %vm641, %v634, 0
        %645 = vmatpush.msra.mxu0 0.0
        %646 = vmatpush.msra.mxu0 0.0
        %647 = vmatpush.msra.mxu0 0.0
        %648 = vmatpush.msra.mxu0 0.0
        %649 = vmatpush.msra.mxu0 0.0
        %650 = vmatpush.msra.mxu0 0.0
        %651 = vmatpush.msra.mxu0 0.0
        %652 = vmatpush.msra.mxu0 0.0
        %653 = vmatpush.msra.mxu0 0.0
        %654 = vmatpush.msra.mxu0 0.0
        %655 = vmatpush.msra.mxu0 0.0
        %656 = vmatpush.msra.mxu0 0.0
        %657 = vmatpush.msra.mxu0 0.0
        %658 = vmatpush.msra.mxu0 0.0
        %659 = vmatpush.msra.mxu0 %v636
        %660 = vmatpush.msra.mxu0 %v635
        %661 = vmatmul.f32.gmra.mxu0 %v643
        %v662 = vpop.f32.mrf.mxu0
        %v663 = vadd.f32 %v639, %v662
        %664 = vdwg.mxu0
        %vm665 = vcmask 64512
        %666 = vst.msk [vmem:[%s300] sm:$0xff] %vm665, %v663
        %p667 = scmp.lt.s32.totalorder %s21, 1
        %s668 = scalar_select %p667, %s21, 1
        %s669 = smul.addr %s668, 8
        %s670 = scalar_lea.vmem %s7, %s669
        // Predicated region
        $region53: #{tpu_custom_call.1} parent=47 // pred_check
          %p671 = pneg %p191
        $region54: #{tpu_custom_call.1} parent=47 // pred_check_branch
          %673 = sbr.rel (%p671) target = $region56
        $region55: #{tpu_custom_call.1} parent=47 // pred_region
          _
        $region56: #{tpu_custom_call.1} parent=47 // pred_fallthru
          _
      $region48: #{tpu_custom_call.1} parent=5 // pred_fallthru
        _
      %p674 = scmp.le.s32.totalorder 2, %s16
      // Predicated region
      $region57: #{tpu_custom_call.1} parent=5 // pred_check
        %p675 = pneg %p674
      $region58: #{tpu_custom_call.1} parent=5 // pred_check_branch
        %677 = sbr.rel (%p675) target = $region60
      $region59: #{tpu_custom_call.1} parent=5 // pred_region
        %s678 = ssub.s32 %s16, 2
        // Predicated region
        $region61: #{tpu_custom_call.1} parent=59 // pred_check
          %p679 = pneg %p197
        $region62: #{tpu_custom_call.1} parent=59 // pred_check_branch
          %681 = sbr.rel (%p679) target = $region64
        $region63: #{tpu_custom_call.1} parent=59 // pred_region
          %p682 = scmp.lt.s32.totalorder %s22, 1
          %s683 = scalar_select %p682, %s22, 1
          %s684 = smul.addr %s683, 8
          %s685 = scalar_lea.vmem %s7, %s684
        $region64: #{tpu_custom_call.1} parent=59 // pred_fallthru
          _
      $region60: #{tpu_custom_call.1} parent=5 // pred_fallthru
        _
    $region6: #{tpu_custom_call.1} parent=1 // loop_footer
      %s20 = sadd.s32 1, %s16
    $region7: #{tpu_custom_call.1} parent=1 // loop_footer_branch
      %15 = sbr.rel target = $region3
    $region8: #{tpu_custom_call.1} parent=1 // loop_exit
      _
    %686 = vsyncpa [#allocation3], 1
    %s687 = scalar_lea.sflag [#allocation3], 1
    %688 = vsyncpa %s687, 1

</llo_original>
